<compile_context>
chip_gen: v7x
topology: tpu7x:2x2x1
jax: 0.10.0
libtpu: 0.0.40
codegen_flags: <defaults>
</compile_context>

<pallas_src>
import functools

import jax
import jax.numpy as jnp
import numpy as np
from jax.experimental import pallas as pl
from jax.experimental.pallas import tpu as pltpu


def bsconv_kernel(x_ref, ss_ref, w_ref, mask_ref, o_ref, pf_ref,
                  *, H, W, Cin, Cout, imgs, off):
    """imgs images per step: BN(inference) + ReLU + cat(r,-r) + non-negative 3x3 conv (pad=1).

    x_ref:    (imgs, Cin, H*W)       input images, channel-major, spatial flattened (lane axis)
    ss_ref:   (Cin, 2)               folded BatchNorm [scale, shift]
    w_ref:    (Cout, 9*Cin + 1)      folded+clamped conv weight (im2col, k = dy*3+dx) + bias col
    mask_ref: (2, imgs*H*W)          [left, right] wrap-around masks, tiled per image
    o_ref:    (imgs, Cout, H*W)      output (lane-dense, already NCHW-ordered when reshaped)
    pf_ref:   (imgs, Cin, H*W+2*off) VMEM scratch: zero-haloed flat activation (off lane-aligned)
    """
    HW = H * W
    LANES = imgs * HW

    # ---- BatchNorm (inference) + ReLU into the lane-aligned interior of the halo buffer. ----
    scale = ss_ref[:, 0:1][None]                      # (1, Cin, 1)
    shift = ss_ref[:, 1:2][None]
    pf_ref[:, :, off:off + HW] = jnp.maximum(x_ref[...] * scale + shift, 0.0)

    # Zero only the two lane-aligned halo strips; the interior is fully overwritten above.
    # Done every step so correctness does not depend on which core ran program_id 0.
    zeros_halo = jnp.zeros((imgs, Cin, off), jnp.float32)
    pf_ref[:, :, :off] = zeros_halo
    pf_ref[:, :, off + HW:] = zeros_halo

    # Hoisted horizontal wrap-around masks (dx==1 needs no mask).
    m_left = jnp.broadcast_to(mask_ref[0:1, :], (Cin, LANES))
    m_right = jnp.broadcast_to(mask_ref[1:2, :], (Cin, LANES))

    # ---- im2col in vregs: the 3x3 tap at (dy, dx) of the 1-padded image is a shift of the
    #      flattened image by s = (dy-1)*W + (dx-1).  Vertical out-of-range lands in the zero
    #      halo; horizontal wrap-around is killed by the per-dx mask.  9 taps stacked along K,
    #      images stacked along lanes, plus a ones row so the bias rides the same contraction. ----
    taps = []
    for dy in range(3):
        for dx in range(3):
            start = off + (dy - 1) * W + (dx - 1)     # static, stays inside the halo
            if imgs > 1:
                t = jnp.concatenate(
                    [pf_ref[i, :, start:start + HW] for i in range(imgs)], axis=1)
            else:
                t = pf_ref[0, :, start:start + HW]
            if dx == 0:
                t = t * m_left
            elif dx == 2:
                t = t * m_right
            taps.append(t)                             # (Cin, LANES)
    ones_row = jnp.ones((1, LANES), jnp.float32)       # bias row
    patch = jnp.concatenate(taps + [ones_row], axis=0)  # (9*Cin+1, LANES), lives in vregs

    # ---- single MXU matmul; output lane dim = imgs*HW -> unmasked lane-dense stores. ----
    out = jnp.dot(w_ref[...], patch, preferred_element_type=jnp.float32)   # (Cout, LANES)
    for i in range(imgs):
        o_ref[i] = out[:, i * HW:(i + 1) * HW]


def _device_kind():
    try:
        return jax.devices()[0].device_kind.lower()
    except Exception:
        return ""


def _dual_tensorcore():
    # v7x has 2 TensorCores per chip; v5e/v6e have 1.
    return "v7" in _device_kind()


def bsconv_forward(x_nchw, params, images_per_step=None):
    """Forward pass. x_nchw: (N, Cin, H, W) f32 -> (N, Cout, H, W) f32."""
    weight, bias, gamma, beta, rmean, rvar, eps = (
        params["weight"], params["bias"], params["gamma"], params["beta"],
        params["running_mean"], params["running_var"], params["eps"])

    N, Cin, H, W = x_nchw.shape
    Cout = weight.shape[0]
    assert weight.shape == (Cout, 2 * Cin, 3, 3)
    HW = H * W
    OFF = max(128, -(-(W + 1) // 128) * 128)           # lane-aligned halo, >= W+1
    PADF = HW + 2 * OFF

    # --- images per grid step: fold the batch on single-TC chips, keep >=2 steps on v7x ---
    if images_per_step is None:
        if _dual_tensorcore() and N >= 2:
            images_per_step = max(1, N // 2)
        else:
            images_per_step = N
        # keep the per-step footprint comfortably inside scoped VMEM
        per_img_bytes = 4 * (Cin * PADF + 2 * Cin * HW + 2 * Cout * HW + 10 * Cin * HW)
        images_per_step = min(images_per_step,
                              max(1, (8 * 1024 * 1024) // max(per_img_bytes, 1)))
    imgs = int(max(1, images_per_step))
    while N % imgs:
        imgs -= 1
    steps = N // imgs

    # --- fold BatchNorm into per-channel scale/shift (inference mode), packed as one operand ---
    scale = (gamma / jnp.sqrt(rvar + eps)).astype(jnp.float32)
    shift = (beta - rmean * scale).astype(jnp.float32)
    ss = jnp.stack([scale, shift], axis=1)                                  # (Cin, 2)

    # --- NonNegativeConv2d weight: clamp each half FIRST, fold cat(r,-r); im2col + bias col ---
    w = weight.astype(jnp.float32)
    weff = jnp.maximum(w[:, :Cin], 0.0) - jnp.maximum(w[:, Cin:], 0.0)      # (Cout, Cin, 3, 3)
    w_flat = jnp.transpose(weff, (0, 2, 3, 1)).reshape(Cout, 9 * Cin)       # k = dy*3+dx major
    w_aug = jnp.concatenate(
        [w_flat, bias.astype(jnp.float32)[:, None]], axis=1)                # (Cout, 9*Cin+1)

    # --- per-dx horizontal wrap masks, tiled over the images packed into one step ---
    col = np.arange(HW) % W
    masks_np = np.stack([col != 0, col != W - 1]).astype(np.float32)        # (2, HW)
    masks = jnp.asarray(np.tile(masks_np, (1, imgs)))                       # (2, imgs*HW)

    # Free metadata reshape of the NCHW input (no transpose, no pad, no extra HBM round trip).
    x_flat = x_nchw.reshape(N, Cin, HW).astype(jnp.float32)

    if steps >= 2 and _dual_tensorcore():
        dim_sem = (getattr(pltpu, "CORE_PARALLEL", "parallel"),)            # engage both v7x TCs
    else:
        dim_sem = ("parallel",)

    out_flat = pl.pallas_call(
        functools.partial(bsconv_kernel, H=H, W=W, Cin=Cin, Cout=Cout,
                          imgs=imgs, off=OFF),
        out_shape=jax.ShapeDtypeStruct((N, Cout, HW), jnp.float32),
        grid=(steps,),
        in_specs=[
            pl.BlockSpec((imgs, Cin, HW), lambda n: (n, 0, 0)),
            pl.BlockSpec((Cin, 2), lambda n: (0, 0)),
            pl.BlockSpec((Cout, 9 * Cin + 1), lambda n: (0, 0)),
            pl.BlockSpec((2, imgs * HW), lambda n: (0, 0)),
        ],
        out_specs=pl.BlockSpec((imgs, Cout, HW), lambda n: (n, 0, 0)),
        scratch_shapes=[pltpu.VMEM((imgs, Cin, PADF), jnp.float32)],        # zero-haloed activations
        compiler_params=pltpu.CompilerParams(dimension_semantics=dim_sem),
    )(x_flat, ss, w_aug, masks)

    # Output is already NCHW-ordered: metadata reshape only (no transpose back).
    return out_flat.reshape(N, Cout, H, W)


def bsconv_reference(x_nchw, params):
    """Pure-JAX reference (matches the PyTorch forward, inference-mode BN)."""
    weight, bias, gamma, beta, rmean, rvar, eps = (
        params["weight"], params["bias"], params["gamma"], params["beta"],
        params["running_mean"], params["running_var"], params["eps"])
    scale = gamma / jnp.sqrt(rvar + eps)
    shift = beta - rmean * scale
    bn = x_nchw * scale[None, :, None, None] + shift[None, :, None, None]
    r = jnp.maximum(bn, 0.0)
    a = jnp.concatenate([r, -r], axis=1)                          # cat on channel dim
    w = jnp.maximum(weight, 0.0)                                  # NonNegativeConv2d clamp
    out = jax.lax.conv_general_dilated(
        a, w, window_strides=(1, 1), padding=((1, 1), (1, 1)),
        dimension_numbers=("NCHW", "OIHW", "NCHW"))
    return out + bias[None, :, None, None]


def init_params(key, inplanes, outplanes):
    k_w, k_g, k_b, k_m, k_v = jax.random.split(key, 5)
    fan_in = 2 * inplanes * 3 * 3
    bound = float(np.sqrt(6.0 / fan_in))                          # kaiming_uniform_ (a=0)
    weight = jax.random.uniform(k_w, (outplanes, 2 * inplanes, 3, 3),
                                jnp.float32, -bound, bound)
    bias = jnp.zeros((outplanes,), jnp.float32)                   # NonNegativeConv2d bias init
    gamma = jax.random.uniform(k_g, (inplanes,), jnp.float32, 0.5, 1.5)
    beta = 0.1 * jax.random.normal(k_b, (inplanes,), jnp.float32)
    running_mean = 0.1 * jax.random.normal(k_m, (inplanes,), jnp.float32)
    running_var = jax.random.uniform(k_v, (inplanes,), jnp.float32, 0.5, 1.5)
    return dict(weight=weight, bias=bias, gamma=gamma, beta=beta,
                running_mean=running_mean, running_var=running_var, eps=1e-5)


if __name__ == "__main__":
    key = jax.random.PRNGKey(0)
    k_x, k_p = jax.random.split(key)

    N, inplanes, outplanes, H, W = 2, 4, 8, 16, 16
    x = jax.random.normal(k_x, (N, inplanes, H, W), jnp.float32)
    params = init_params(k_p, inplanes, outplanes)

    out = jax.block_until_ready(bsconv_forward(x, params))
    ref = jax.block_until_ready(bsconv_reference(x, params))

    assert out.shape == (N, outplanes, H, W), out.shape
    np.testing.assert_allclose(np.asarray(out), np.asarray(ref), rtol=1e-4, atol=1e-4)
    print("KERNEL_OK")
</pallas_src>

<mosaic_0001>
module attributes {stable_mosaic.version = 11 : i64} {
  func.func @bsconv_kernel(%arg0: i32, %arg1: memref<2x4x256xf32, #tpu.memory_space<vmem>>, %arg2: memref<4x2xf32, #tpu.memory_space<vmem>>, %arg3: memref<8x37xf32, #tpu.memory_space<vmem>>, %arg4: memref<2x512xf32, #tpu.memory_space<vmem>>, %arg5: memref<2x8x256xf32, #tpu.memory_space<vmem>>, %arg6: memref<2x4x512xf32, #tpu.memory_space<vmem>>) attributes {dimension_semantics = [#tpu.dimension_semantics<parallel>], iteration_bounds = array<i64: 1>, scalar_prefetch = 0 : i64, scratch_operands = 1 : i64, tpu.core_type = #tpu.core_type<tc>, window_params = [{transform_indices = @transform_0, window_bounds = array<i64: 2, 4, 256>}, {pipeline_mode = #tpu.pipeline_mode<synchronous>, transform_indices = @transform_1, window_bounds = array<i64: 4, 2>}, {pipeline_mode = #tpu.pipeline_mode<synchronous>, transform_indices = @transform_2, window_bounds = array<i64: 8, 37>}, {pipeline_mode = #tpu.pipeline_mode<synchronous>, transform_indices = @transform_3, window_bounds = array<i64: 2, 512>}, {transform_indices = @transform_4, window_bounds = array<i64: 2, 8, 256>}]} {
    %c0 = arith.constant 0 : index
    %c0_0 = arith.constant 0 : index
    %0 = vector.load %arg2[%c0, %c0_0] : memref<4x2xf32, #tpu.memory_space<vmem>>, vector<4x1xf32>
    %1 = vector.shape_cast %0 : vector<4x1xf32> to vector<1x4x1xf32>
    %c0_1 = arith.constant 0 : index
    %c1 = arith.constant 1 : index
    %2 = vector.load %arg2[%c0_1, %c1] : memref<4x2xf32, #tpu.memory_space<vmem>>, vector<4x1xf32>
    %3 = vector.shape_cast %2 : vector<4x1xf32> to vector<1x4x1xf32>
    %c0_2 = arith.constant 0 : index
    %c0_3 = arith.constant 0 : index
    %c0_4 = arith.constant 0 : index
    %4 = vector.load %arg1[%c0_2, %c0_3, %c0_4] : memref<2x4x256xf32, #tpu.memory_space<vmem>>, vector<2x4x256xf32>
    %5 = vector.broadcast %1 : vector<1x4x1xf32> to vector<2x4x256xf32>
    %6 = arith.mulf %4, %5 : vector<2x4x256xf32>
    %7 = vector.broadcast %3 : vector<1x4x1xf32> to vector<2x4x256xf32>
    %8 = arith.addf %6, %7 : vector<2x4x256xf32>
    %cst = arith.constant 0.000000e+00 : f32
    %9 = vector.broadcast %cst : f32 to vector<2x4x256xf32>
    %10 = arith.maximumf %8, %9 : vector<2x4x256xf32>
    %c0_5 = arith.constant 0 : index
    %c0_6 = arith.constant 0 : index
    %c128 = arith.constant 128 : index
    %11 = vector.load %arg6[%c0_5, %c0_6, %c128] : memref<2x4x512xf32, #tpu.memory_space<vmem>>, vector<2x4x256xf32>
    tpu.vector_store %arg6[%c0_5, %c0_6, %c128], %10 {strides = array<i32>} : memref<2x4x512xf32, #tpu.memory_space<vmem>>, vector<2x4x256xf32>,
    %cst_7 = arith.constant 0.000000e+00 : f32
    %12 = vector.broadcast %cst_7 : f32 to vector<2x4x128xf32>
    %c0_8 = arith.constant 0 : index
    %c0_9 = arith.constant 0 : index
    %c0_10 = arith.constant 0 : index
    %13 = vector.load %arg6[%c0_8, %c0_9, %c0_10] : memref<2x4x512xf32, #tpu.memory_space<vmem>>, vector<2x4x128xf32>
    tpu.vector_store %arg6[%c0_8, %c0_9, %c0_10], %12 {strides = array<i32>} : memref<2x4x512xf32, #tpu.memory_space<vmem>>, vector<2x4x128xf32>,
    %c0_11 = arith.constant 0 : index
    %c0_12 = arith.constant 0 : index
    %c384 = arith.constant 384 : index
    %14 = vector.load %arg6[%c0_11, %c0_12, %c384] : memref<2x4x512xf32, #tpu.memory_space<vmem>>, vector<2x4x128xf32>
    tpu.vector_store %arg6[%c0_11, %c0_12, %c384], %12 {strides = array<i32>} : memref<2x4x512xf32, #tpu.memory_space<vmem>>, vector<2x4x128xf32>,
    %c0_13 = arith.constant 0 : index
    %c0_14 = arith.constant 0 : index
    %15 = vector.load %arg4[%c0_13, %c0_14] : memref<2x512xf32, #tpu.memory_space<vmem>>, vector<1x512xf32>
    %16 = vector.shape_cast %15 : vector<1x512xf32> to vector<1x512xf32>
    %17 = vector.broadcast %16 : vector<1x512xf32> to vector<4x512xf32>
    %c1_15 = arith.constant 1 : index
    %c0_16 = arith.constant 0 : index
    %18 = vector.load %arg4[%c1_15, %c0_16] : memref<2x512xf32, #tpu.memory_space<vmem>>, vector<1x512xf32>
    %19 = vector.shape_cast %18 : vector<1x512xf32> to vector<1x512xf32>
    %20 = vector.broadcast %19 : vector<1x512xf32> to vector<4x512xf32>
    %c0_17 = arith.constant 0 : index
    %c0_18 = arith.constant 0 : index
    %c111 = arith.constant 111 : index
    %21 = vector.load %arg6[%c0_17, %c0_18, %c111] : memref<2x4x512xf32, #tpu.memory_space<vmem>>, vector<1x4x256xf32>
    %22 = vector.shape_cast %21 : vector<1x4x256xf32> to vector<4x256xf32>
    %c1_19 = arith.constant 1 : index
    %c0_20 = arith.constant 0 : index
    %c111_21 = arith.constant 111 : index
    %23 = vector.load %arg6[%c1_19, %c0_20, %c111_21] : memref<2x4x512xf32, #tpu.memory_space<vmem>>, vector<1x4x256xf32>
    %24 = vector.shape_cast %23 : vector<1x4x256xf32> to vector<4x256xf32>
    %25 = tpu.concatenate %22, %24 in 1 : vector<4x256xf32>, vector<4x256xf32> -> vector<4x512xf32>
    %26 = arith.mulf %25, %17 : vector<4x512xf32>
    %c0_22 = arith.constant 0 : index
    %c0_23 = arith.constant 0 : index
    %c112 = arith.constant 112 : index
    %27 = vector.load %arg6[%c0_22, %c0_23, %c112] : memref<2x4x512xf32, #tpu.memory_space<vmem>>, vector<1x4x256xf32>
    %28 = vector.shape_cast %27 : vector<1x4x256xf32> to vector<4x256xf32>
    %c1_24 = arith.constant 1 : index
    %c0_25 = arith.constant 0 : index
    %c112_26 = arith.constant 112 : index
    %29 = vector.load %arg6[%c1_24, %c0_25, %c112_26] : memref<2x4x512xf32, #tpu.memory_space<vmem>>, vector<1x4x256xf32>
    %30 = vector.shape_cast %29 : vector<1x4x256xf32> to vector<4x256xf32>
    %31 = tpu.concatenate %28, %30 in 1 : vector<4x256xf32>, vector<4x256xf32> -> vector<4x512xf32>
    %c0_27 = arith.constant 0 : index
    %c0_28 = arith.constant 0 : index
    %c113 = arith.constant 113 : index
    %32 = vector.load %arg6[%c0_27, %c0_28, %c113] : memref<2x4x512xf32, #tpu.memory_space<vmem>>, vector<1x4x256xf32>
    %33 = vector.shape_cast %32 : vector<1x4x256xf32> to vector<4x256xf32>
    %c1_29 = arith.constant 1 : index
    %c0_30 = arith.constant 0 : index
    %c113_31 = arith.constant 113 : index
    %34 = vector.load %arg6[%c1_29, %c0_30, %c113_31] : memref<2x4x512xf32, #tpu.memory_space<vmem>>, vector<1x4x256xf32>
    %35 = vector.shape_cast %34 : vector<1x4x256xf32> to vector<4x256xf32>
    %36 = tpu.concatenate %33, %35 in 1 : vector<4x256xf32>, vector<4x256xf32> -> vector<4x512xf32>
    %37 = arith.mulf %36, %20 : vector<4x512xf32>
    %c0_32 = arith.constant 0 : index
    %c0_33 = arith.constant 0 : index
    %c127 = arith.constant 127 : index
    %38 = vector.load %arg6[%c0_32, %c0_33, %c127] : memref<2x4x512xf32, #tpu.memory_space<vmem>>, vector<1x4x256xf32>
    %39 = vector.shape_cast %38 : vector<1x4x256xf32> to vector<4x256xf32>
    %c1_34 = arith.constant 1 : index
    %c0_35 = arith.constant 0 : index
    %c127_36 = arith.constant 127 : index
    %40 = vector.load %arg6[%c1_34, %c0_35, %c127_36] : memref<2x4x512xf32, #tpu.memory_space<vmem>>, vector<1x4x256xf32>
    %41 = vector.shape_cast %40 : vector<1x4x256xf32> to vector<4x256xf32>
    %42 = tpu.concatenate %39, %41 in 1 : vector<4x256xf32>, vector<4x256xf32> -> vector<4x512xf32>
    %43 = arith.mulf %42, %17 : vector<4x512xf32>
    %c0_37 = arith.constant 0 : index
    %c0_38 = arith.constant 0 : index
    %c128_39 = arith.constant 128 : index
    %44 = vector.load %arg6[%c0_37, %c0_38, %c128_39] : memref<2x4x512xf32, #tpu.memory_space<vmem>>, vector<1x4x256xf32>
    %45 = vector.shape_cast %44 : vector<1x4x256xf32> to vector<4x256xf32>
    %c1_40 = arith.constant 1 : index
    %c0_41 = arith.constant 0 : index
    %c128_42 = arith.constant 128 : index
    %46 = vector.load %arg6[%c1_40, %c0_41, %c128_42] : memref<2x4x512xf32, #tpu.memory_space<vmem>>, vector<1x4x256xf32>
    %47 = vector.shape_cast %46 : vector<1x4x256xf32> to vector<4x256xf32>
    %48 = tpu.concatenate %45, %47 in 1 : vector<4x256xf32>, vector<4x256xf32> -> vector<4x512xf32>
    %c0_43 = arith.constant 0 : index
    %c0_44 = arith.constant 0 : index
    %c129 = arith.constant 129 : index
    %49 = vector.load %arg6[%c0_43, %c0_44, %c129] : memref<2x4x512xf32, #tpu.memory_space<vmem>>, vector<1x4x256xf32>
    %50 = vector.shape_cast %49 : vector<1x4x256xf32> to vector<4x256xf32>
    %c1_45 = arith.constant 1 : index
    %c0_46 = arith.constant 0 : index
    %c129_47 = arith.constant 129 : index
    %51 = vector.load %arg6[%c1_45, %c0_46, %c129_47] : memref<2x4x512xf32, #tpu.memory_space<vmem>>, vector<1x4x256xf32>
    %52 = vector.shape_cast %51 : vector<1x4x256xf32> to vector<4x256xf32>
    %53 = tpu.concatenate %50, %52 in 1 : vector<4x256xf32>, vector<4x256xf32> -> vector<4x512xf32>
    %54 = arith.mulf %53, %20 : vector<4x512xf32>
    %c0_48 = arith.constant 0 : index
    %c0_49 = arith.constant 0 : index
    %c143 = arith.constant 143 : index
    %55 = vector.load %arg6[%c0_48, %c0_49, %c143] : memref<2x4x512xf32, #tpu.memory_space<vmem>>, vector<1x4x256xf32>
    %56 = vector.shape_cast %55 : vector<1x4x256xf32> to vector<4x256xf32>
    %c1_50 = arith.constant 1 : index
    %c0_51 = arith.constant 0 : index
    %c143_52 = arith.constant 143 : index
    %57 = vector.load %arg6[%c1_50, %c0_51, %c143_52] : memref<2x4x512xf32, #tpu.memory_space<vmem>>, vector<1x4x256xf32>
    %58 = vector.shape_cast %57 : vector<1x4x256xf32> to vector<4x256xf32>
    %59 = tpu.concatenate %56, %58 in 1 : vector<4x256xf32>, vector<4x256xf32> -> vector<4x512xf32>
    %60 = arith.mulf %59, %17 : vector<4x512xf32>
    %c0_53 = arith.constant 0 : index
    %c0_54 = arith.constant 0 : index
    %c144 = arith.constant 144 : index
    %61 = vector.load %arg6[%c0_53, %c0_54, %c144] : memref<2x4x512xf32, #tpu.memory_space<vmem>>, vector<1x4x256xf32>
    %62 = vector.shape_cast %61 : vector<1x4x256xf32> to vector<4x256xf32>
    %c1_55 = arith.constant 1 : index
    %c0_56 = arith.constant 0 : index
    %c144_57 = arith.constant 144 : index
    %63 = vector.load %arg6[%c1_55, %c0_56, %c144_57] : memref<2x4x512xf32, #tpu.memory_space<vmem>>, vector<1x4x256xf32>
    %64 = vector.shape_cast %63 : vector<1x4x256xf32> to vector<4x256xf32>
    %65 = tpu.concatenate %62, %64 in 1 : vector<4x256xf32>, vector<4x256xf32> -> vector<4x512xf32>
    %c0_58 = arith.constant 0 : index
    %c0_59 = arith.constant 0 : index
    %c145 = arith.constant 145 : index
    %66 = vector.load %arg6[%c0_58, %c0_59, %c145] : memref<2x4x512xf32, #tpu.memory_space<vmem>>, vector<1x4x256xf32>
    %67 = vector.shape_cast %66 : vector<1x4x256xf32> to vector<4x256xf32>
    %c1_60 = arith.constant 1 : index
    %c0_61 = arith.constant 0 : index
    %c145_62 = arith.constant 145 : index
    %68 = vector.load %arg6[%c1_60, %c0_61, %c145_62] : memref<2x4x512xf32, #tpu.memory_space<vmem>>, vector<1x4x256xf32>
    %69 = vector.shape_cast %68 : vector<1x4x256xf32> to vector<4x256xf32>
    %70 = tpu.concatenate %67, %69 in 1 : vector<4x256xf32>, vector<4x256xf32> -> vector<4x512xf32>
    %71 = arith.mulf %70, %20 : vector<4x512xf32>
    %cst_63 = arith.constant 1.000000e+00 : f32
    %72 = vector.broadcast %cst_63 : f32 to vector<1x512xf32>
    %73 = tpu.concatenate %26, %31, %37, %43, %48, %54, %60, %65, %71, %72 in 0 : vector<4x512xf32>, vector<4x512xf32>, vector<4x512xf32>, vector<4x512xf32>, vector<4x512xf32>, vector<4x512xf32>, vector<4x512xf32>, vector<4x512xf32>, vector<4x512xf32>, vector<1x512xf32> -> vector<37x512xf32>
    %c0_64 = arith.constant 0 : index
    %c0_65 = arith.constant 0 : index
    %74 = vector.load %arg3[%c0_64, %c0_65] : memref<8x37xf32, #tpu.memory_space<vmem>>, vector<8x37xf32>
    %cst_66 = arith.constant dense<0.000000e+00> : vector<8x512xf32>
    %75 = tpu.matmul %74, %73, %cst_66 {dimension_numbers = #tpu.dot_dimension_numbers<[1], [0], [0], [1], [0, 0, 1, 1], [], []>} : vector<8x37xf32>, vector<37x512xf32>, vector<8x512xf32> -> vector<8x512xf32>
    %76 = vector.extract_strided_slice %75 {offsets = [0, 0], sizes = [8, 256], strides = [1, 1]} : vector<8x512xf32> to vector<8x256xf32>
    %c0_67 = arith.constant 0 : index
    %c0_68 = arith.constant 0 : index
    %c0_69 = arith.constant 0 : index
    %77 = vector.load %arg5[%c0_67, %c0_68, %c0_69] : memref<2x8x256xf32, #tpu.memory_space<vmem>>, vector<1x8x256xf32>
    %78 = vector.shape_cast %77 : vector<1x8x256xf32> to vector<8x256xf32>
    %79 = vector.shape_cast %76 : vector<8x256xf32> to vector<1x8x256xf32>
    tpu.vector_store %arg5[%c0_67, %c0_68, %c0_69], %79 {strides = array<i32>} : memref<2x8x256xf32, #tpu.memory_space<vmem>>, vector<1x8x256xf32>,
    %80 = vector.extract_strided_slice %75 {offsets = [0, 256], sizes = [8, 256], strides = [1, 1]} : vector<8x512xf32> to vector<8x256xf32>
    %c1_70 = arith.constant 1 : index
    %c0_71 = arith.constant 0 : index
    %c0_72 = arith.constant 0 : index
    %81 = vector.load %arg5[%c1_70, %c0_71, %c0_72] : memref<2x8x256xf32, #tpu.memory_space<vmem>>, vector<1x8x256xf32>
    %82 = vector.shape_cast %81 : vector<1x8x256xf32> to vector<8x256xf32>
    %83 = vector.shape_cast %80 : vector<8x256xf32> to vector<1x8x256xf32>
    tpu.vector_store %arg5[%c1_70, %c0_71, %c0_72], %83 {strides = array<i32>} : memref<2x8x256xf32, #tpu.memory_space<vmem>>, vector<1x8x256xf32>,
    return
  }
  func.func @transform_0(%arg0: i32) -> (i32, i32, i32) {
    %c0_i32 = arith.constant 0 : i32
    %c0_i32_0 = arith.constant 0 : i32
    %c0_i32_1 = arith.constant 0 : i32
    return %arg0, %c0_i32, %c0_i32_0 : i32, i32, i32
  }
  func.func @transform_1(%arg0: i32) -> (i32, i32) {
    %c0_i32 = arith.constant 0 : i32
    %c0_i32_0 = arith.constant 0 : i32
    %c0_i32_1 = arith.constant 0 : i32
    return %c0_i32, %c0_i32_0 : i32, i32
  }
  func.func @transform_2(%arg0: i32) -> (i32, i32) {
    %c0_i32 = arith.constant 0 : i32
    %c0_i32_0 = arith.constant 0 : i32
    %c0_i32_1 = arith.constant 0 : i32
    return %c0_i32, %c0_i32_0 : i32, i32
  }
  func.func @transform_3(%arg0: i32) -> (i32, i32) {
    %c0_i32 = arith.constant 0 : i32
    %c0_i32_0 = arith.constant 0 : i32
    %c0_i32_1 = arith.constant 0 : i32
    return %c0_i32, %c0_i32_0 : i32, i32
  }
  func.func @transform_4(%arg0: i32) -> (i32, i32, i32) {
    %c0_i32 = arith.constant 0 : i32
    %c0_i32_0 = arith.constant 0 : i32
    %c0_i32_1 = arith.constant 0 : i32
    return %arg0, %c0_i32, %c0_i32_0 : i32, i32, i32
  }
}

</mosaic_0001>

<llo_original>
// kernel: tpu_custom_call.1
$region0: #{tpu_custom_call.1}
  #allocation0 [shape = 'u32[]', space=smem, size = 0x4, offset = 0x4, fixed_abs, tag = 'smem constant byte address 0x4 - core index']
  #allocation1 [shape = 'u32[144,128]{1,0:T(1,128)}', space=vmem, size = 0x12000, scoped, tag = 'internal scratch']
  #allocation2 [shape = 'f32[2,4,512]{2,1,0:T(4,128)}', space=vmem, size = 0x4000, scoped, tag = 'scratch operand']
  %s0 = inlined_call_operand.hbm [shape: f32[2,4,256], index: 0, kind: input, shape index: {}]
  %s1 = inlined_call_operand.vmem [shape: f32[4,2], index: 1, kind: input, shape index: {}]
  %s2 = inlined_call_operand.vmem [shape: f32[8,37], index: 2, kind: input, shape index: {}]
  %s3 = inlined_call_operand.vmem [shape: f32[2,512], index: 3, kind: input, shape index: {}]
  %s4 = inlined_call_operand.hbm [shape: f32[2,8,256], index: 4, kind: output, shape index: {}]
  %s5 = sld [smem:[#allocation0]]
  $region30: #{tpu_custom_call.1} parent=0
    _
  %s7 = ssub.s32 1, %s5
  %s8 = scalar_select 0, %s7, %s5
  $region1: #{tpu_custom_call.1} parent=0
    #allocation3 [shape = 'u8[8192]{0}', space=vmem, size = 0x2000, scoped, tag = 'input window, operand 0, single buffered']
    #allocation4 [shape = 's32[1]{0}', space=sflag, size = 0x4, scoped, tag = 'scoped memory for tpu_custom_call.1']
    #allocation5 [shape = 's32[1]{0}', space=sflag, size = 0x4, scoped, tag = 'scoped memory for tpu_custom_call.1']
    #allocation6 [shape = 'u8[16384]{0}', space=vmem, size = 0x4000, scoped, tag = 'output window, operand 0, single buffered']
    %9 = vsyncpa [#allocation4], 0
    %10 = vsyncpa [#allocation5], 0
    // Predicated region
    $region2: #{tpu_custom_call.1} parent=1 // pred_check
      _
    $region3: #{tpu_custom_call.1} parent=1 // pred_check_branch
      %12 = sbr.rel (0) target = $region5
    $region4: #{tpu_custom_call.1} parent=1 // pred_region
      %s14 = ssub.s32 256, 256
      %15 = vsyncadd [#allocation4], %s14
      %s16 = sshll.u32 [#allocation3], 4
      %s17 = int_to_ptr.vmem [resolvable:$true] %s16
      %22 = dma.hbm_to_vmem [thread:$0]  %s0, 256, %s17, [#allocation4], 128, 128, 8
    $region5: #{tpu_custom_call.1} parent=1 // pred_fallthru
      _
    // Predicated region
    $region6: #{tpu_custom_call.1} parent=1 // pred_check
      _
    $region7: #{tpu_custom_call.1} parent=1 // pred_check_branch
      %24 = sbr.rel (0) target = $region9
    $region8: #{tpu_custom_call.1} parent=1 // pred_region
      _
    $region9: #{tpu_custom_call.1} parent=1 // pred_fallthru
      _
    // Predicated region
    $region10: #{tpu_custom_call.1} parent=1 // pred_check
      _
    $region11: #{tpu_custom_call.1} parent=1 // pred_check_branch
      %26 = sbr.rel (0) target = $region13
    $region12: #{tpu_custom_call.1} parent=1 // pred_region
      _
    $region13: #{tpu_custom_call.1} parent=1 // pred_fallthru
      _
    // Predicated region
    $region14: #{tpu_custom_call.1} parent=1 // pred_check
      _
    $region15: #{tpu_custom_call.1} parent=1 // pred_check_branch
      %28 = sbr.rel (0) target = $region17
    $region16: #{tpu_custom_call.1} parent=1 // pred_region
      _
    $region17: #{tpu_custom_call.1} parent=1 // pred_fallthru
      _
    // Predicated region
    $region18: #{tpu_custom_call.1} parent=1 // pred_check
      _
    $region19: #{tpu_custom_call.1} parent=1 // pred_check_branch
      %30 = sbr.rel (0) target = $region21
    $region20: #{tpu_custom_call.1} parent=1 // pred_region
      %31 = dma.done [#allocation4], 256
    $region21: #{tpu_custom_call.1} parent=1 // pred_fallthru
      _
    %v32 = vld [vmem:[%s1] sm:$0xf]
    %v33 = vld [vmem:[#allocation3] sm:$0xff]
    %v34 = vld [vmem:[#allocation3 + $0x8] sm:$0xff]
    %36 = vset.pattern.permute.xlu0 0
    %37 = vperm.xlu0 %36, %v32
    %v38 = vpop.permute.xlu0 %37
    %v40 = vunpack.c.l.s4 839922192
    %v41 = vunpack.c.0.s8 %v40
    %v42 = vlaneseq
    %v43 = vshrl.u32 %v42, 7
    %v44 = vsub.s32 %v41, %v43
    %v45 = vrot.slane %v38, %v44
    %v47 = vmul.f32 %v33, %v45
    %v48 = vmul.f32 %v34, %v45
    %49 = vset.pattern.permute.xlu0 1
    %50 = vperm.xlu0 %49, %v32
    %v51 = vpop.permute.xlu0 %50
    %v53 = vunpack.c.l.s4 839922192
    %v54 = vunpack.c.0.s8 %v53
    %v55 = vlaneseq
    %v56 = vshrl.u32 %v55, 7
    %v57 = vsub.s32 %v54, %v56
    %v58 = vrot.slane %v51, %v57
    %v60 = vadd.f32 %v47, %v58
    %v61 = vadd.f32 %v48, %v58
    %v62 = vmax.f32 %v60, 0.0
    %v63 = vmax.f32 %v61, 0.0
    %64 = vst [vmem:[#allocation2 + $0x4] sm:$0xff] %v62
    %65 = vst [vmem:[#allocation2 + $0x14] sm:$0xff] %v63
    %66 = vst [vmem:[#allocation2] sm:$0xf] 0.0
    %67 = vst [vmem:[#allocation2 + $0x10] sm:$0xf] 0.0
    %68 = vst [vmem:[#allocation2 + $0xc] sm:$0xf] 0.0
    %69 = vst [vmem:[#allocation2 + $0x1c] sm:$0xf] 0.0
    %v70 = vld [vmem:[%s3] ss:$2 sm:$0xf]
    %v72 = vlaneseq
    %v73 = vshrl.u32 %v72, 7
    %v74 = vsub.s32 0, %v73
    %v75 = vrot.slane %v70, %v74
    %v76 = vlaneseq
    %v77 = vshrl.u32 %v76, 7
    %v78 = vsub.s32 1, %v77
    %v79 = vrot.slane %v70, %v78
    %v80 = vlaneseq
    %v81 = vshrl.u32 %v80, 7
    %v82 = vsub.s32 2, %v81
    %v83 = vrot.slane %v70, %v82
    %v84 = vlaneseq
    %v85 = vshrl.u32 %v84, 7
    %v86 = vsub.s32 3, %v85
    %v87 = vrot.slane %v70, %v86
    %s92 = scalar_lea.vmem %s3, 1
    %v93 = vld [vmem:[%s92] ss:$2 sm:$0xf]
    %v95 = vlaneseq
    %v96 = vshrl.u32 %v95, 7
    %v97 = vsub.s32 0, %v96
    %v98 = vrot.slane %v93, %v97
    %v99 = vlaneseq
    %v100 = vshrl.u32 %v99, 7
    %v101 = vsub.s32 1, %v100
    %v102 = vrot.slane %v93, %v101
    %v103 = vlaneseq
    %v104 = vshrl.u32 %v103, 7
    %v105 = vsub.s32 2, %v104
    %v106 = vrot.slane %v93, %v105
    %v107 = vlaneseq
    %v108 = vshrl.u32 %v107, 7
    %v109 = vsub.s32 3, %v108
    %v110 = vrot.slane %v93, %v109
    %v115 = vld [vmem:[#allocation2] sm:$0xff]
    %v116 = vld [vmem:[#allocation2 + $0x8] sm:$0xf]
    %s117 = scalar_lea.vmem [#allocation2], 16
    %v118 = vld [vmem:[%s117] sm:$0xff]
    %v119 = vld [vmem:[%s117 + $0x8] sm:$0xf]
    %v122 = vcombine.high %v115, %v115
    %123 = vrot.lane.b32.xlu0 %v115, 17
    %v124 = vpop.permute.xlu0 %123
    %125 = vrot.lane.b32.xlu0 %v122, 17
    %v126 = vpop.permute.xlu0 %125
    %127 = vrot.lane.b32.xlu0 %v116, 17
    %v128 = vpop.permute.xlu0 %127
    %vm129 = vcmask 138240
    %v130 = vsel %vm129, %v124, %v126
    %v131 = vsel %vm129, %v126, %v128
    %v136 = vcombine.high %v118, %v118
    %137 = vrot.lane.b32.xlu0 %v118, 17
    %v138 = vpop.permute.xlu0 %137
    %139 = vrot.lane.b32.xlu0 %v136, 17
    %v140 = vpop.permute.xlu0 %139
    %141 = vrot.lane.b32.xlu0 %v119, 17
    %v142 = vpop.permute.xlu0 %141
    %v143 = vsel %vm129, %v138, %v140
    %v144 = vsel %vm129, %v140, %v142
    %v147 = vmul.f32 %v130, %v75
    %v148 = vmul.f32 %v131, %v79
    %v149 = vmul.f32 %v143, %v83
    %v150 = vmul.f32 %v144, %v87
    %151 = vrot.lane.b32.xlu0 %v115, 16
    %v152 = vpop.permute.xlu0 %151
    %153 = vrot.lane.b32.xlu0 %v122, 16
    %v154 = vpop.permute.xlu0 %153
    %155 = vrot.lane.b32.xlu0 %v116, 16
    %v156 = vpop.permute.xlu0 %155
    %vm157 = vcmask 130048
    %v158 = vsel %vm157, %v152, %v154
    %v159 = vsel %vm157, %v154, %v156
    %160 = vrot.lane.b32.xlu0 %v118, 16
    %v161 = vpop.permute.xlu0 %160
    %162 = vrot.lane.b32.xlu0 %v136, 16
    %v163 = vpop.permute.xlu0 %162
    %164 = vrot.lane.b32.xlu0 %v119, 16
    %v165 = vpop.permute.xlu0 %164
    %v166 = vsel %vm157, %v161, %v163
    %v167 = vsel %vm157, %v163, %v165
    %168 = vrot.lane.b32.xlu0 %v115, 15
    %v169 = vpop.permute.xlu0 %168
    %170 = vrot.lane.b32.xlu0 %v122, 15
    %v171 = vpop.permute.xlu0 %170
    %172 = vrot.lane.b32.xlu0 %v116, 15
    %v173 = vpop.permute.xlu0 %172
    %vm174 = vcmask 121856
    %v175 = vsel %vm174, %v169, %v171
    %v176 = vsel %vm174, %v171, %v173
    %179 = vrot.lane.b32.xlu0 %v118, 15
    %v180 = vpop.permute.xlu0 %179
    %181 = vrot.lane.b32.xlu0 %v136, 15
    %v182 = vpop.permute.xlu0 %181
    %183 = vrot.lane.b32.xlu0 %v119, 15
    %v184 = vpop.permute.xlu0 %183
    %v185 = vsel %vm174, %v180, %v182
    %v186 = vsel %vm174, %v182, %v184
    %v189 = vmul.f32 %v175, %v98
    %v190 = vmul.f32 %v176, %v102
    %v191 = vmul.f32 %v185, %v106
    %v192 = vmul.f32 %v186, %v110
    %193 = vrot.lane.b32.xlu0 %v115, 1
    %v194 = vpop.permute.xlu0 %193
    %195 = vrot.lane.b32.xlu0 %v122, 1
    %v196 = vpop.permute.xlu0 %195
    %197 = vrot.lane.b32.xlu0 %v116, 1
    %v198 = vpop.permute.xlu0 %197
    %vm199 = vcmask 7168
    %v200 = vsel %vm199, %v194, %v196
    %v201 = vsel %vm199, %v196, %v198
    %204 = vrot.lane.b32.xlu0 %v118, 1
    %v205 = vpop.permute.xlu0 %204
    %206 = vrot.lane.b32.xlu0 %v136, 1
    %v207 = vpop.permute.xlu0 %206
    %208 = vrot.lane.b32.xlu0 %v119, 1
    %v209 = vpop.permute.xlu0 %208
    %v210 = vsel %vm199, %v205, %v207
    %v211 = vsel %vm199, %v207, %v209
    %v214 = vmul.f32 %v200, %v75
    %v215 = vmul.f32 %v201, %v79
    %v216 = vmul.f32 %v210, %v83
    %v217 = vmul.f32 %v211, %v87
    %v218 = vld [vmem:[#allocation2 + $0x4] sm:$0xff]
    %v219 = vld [vmem:[%s117 + $0x4] sm:$0xff]
    %v221 = vcombine.high %v218, %v218
    %v224 = vcombine.high %v219, %v219
    %v226 = vld [vmem:[#allocation2 + $0xc] sm:$0xf]
    %v227 = vld [vmem:[%s117 + $0xc] sm:$0xf]
    %229 = vrot.lane.b32.xlu0 %v218, 127
    %v230 = vpop.permute.xlu0 %229
    %231 = vrot.lane.b32.xlu0 %v221, 127
    %v232 = vpop.permute.xlu0 %231
    %233 = vrot.lane.b32.xlu0 %v226, 127
    %v234 = vpop.permute.xlu0 %233
    %vm235 = vcmask 1039360
    %v236 = vsel %vm235, %v230, %v232
    %v237 = vsel %vm235, %v232, %v234
    %241 = vrot.lane.b32.xlu0 %v219, 127
    %v242 = vpop.permute.xlu0 %241
    %243 = vrot.lane.b32.xlu0 %v224, 127
    %v244 = vpop.permute.xlu0 %243
    %245 = vrot.lane.b32.xlu0 %v227, 127
    %v246 = vpop.permute.xlu0 %245
    %v247 = vsel %vm235, %v242, %v244
    %v248 = vsel %vm235, %v244, %v246
    %v251 = vmul.f32 %v236, %v98
    %v252 = vmul.f32 %v237, %v102
    %v253 = vmul.f32 %v247, %v106
    %v254 = vmul.f32 %v248, %v110
    %255 = vrot.lane.b32.xlu0 %v218, 113
    %v256 = vpop.permute.xlu0 %255
    %257 = vrot.lane.b32.xlu0 %v221, 113
    %v258 = vpop.permute.xlu0 %257
    %259 = vrot.lane.b32.xlu0 %v226, 113
    %v260 = vpop.permute.xlu0 %259
    %vm261 = vcmask 924672
    %v262 = vsel %vm261, %v256, %v258
    %v263 = vsel %vm261, %v258, %v260
    %266 = vrot.lane.b32.xlu0 %v219, 113
    %v267 = vpop.permute.xlu0 %266
    %268 = vrot.lane.b32.xlu0 %v224, 113
    %v269 = vpop.permute.xlu0 %268
    %270 = vrot.lane.b32.xlu0 %v227, 113
    %v271 = vpop.permute.xlu0 %270
    %v272 = vsel %vm261, %v267, %v269
    %v273 = vsel %vm261, %v269, %v271
    %v276 = vmul.f32 %v262, %v75
    %v277 = vmul.f32 %v263, %v79
    %v278 = vmul.f32 %v272, %v83
    %v279 = vmul.f32 %v273, %v87
    %280 = vrot.lane.b32.xlu0 %v218, 112
    %v281 = vpop.permute.xlu0 %280
    %282 = vrot.lane.b32.xlu0 %v221, 112
    %v283 = vpop.permute.xlu0 %282
    %284 = vrot.lane.b32.xlu0 %v226, 112
    %v285 = vpop.permute.xlu0 %284
    %vm286 = vcmask 916480
    %v287 = vsel %vm286, %v281, %v283
    %v288 = vsel %vm286, %v283, %v285
    %289 = vrot.lane.b32.xlu0 %v219, 112
    %v290 = vpop.permute.xlu0 %289
    %291 = vrot.lane.b32.xlu0 %v224, 112
    %v292 = vpop.permute.xlu0 %291
    %293 = vrot.lane.b32.xlu0 %v227, 112
    %v294 = vpop.permute.xlu0 %293
    %v295 = vsel %vm286, %v290, %v292
    %v296 = vsel %vm286, %v292, %v294
    %297 = vrot.lane.b32.xlu0 %v218, 111
    %v298 = vpop.permute.xlu0 %297
    %299 = vrot.lane.b32.xlu0 %v221, 111
    %v300 = vpop.permute.xlu0 %299
    %301 = vrot.lane.b32.xlu0 %v226, 111
    %v302 = vpop.permute.xlu0 %301
    %vm303 = vcmask 908288
    %v304 = vsel %vm303, %v298, %v300
    %v305 = vsel %vm303, %v300, %v302
    %308 = vrot.lane.b32.xlu0 %v219, 111
    %v309 = vpop.permute.xlu0 %308
    %310 = vrot.lane.b32.xlu0 %v224, 111
    %v311 = vpop.permute.xlu0 %310
    %312 = vrot.lane.b32.xlu0 %v227, 111
    %v313 = vpop.permute.xlu0 %312
    %v314 = vsel %vm303, %v309, %v311
    %v315 = vsel %vm303, %v311, %v313
    %v318 = vmul.f32 %v304, %v98
    %v319 = vmul.f32 %v305, %v102
    %v320 = vmul.f32 %v314, %v106
    %v321 = vmul.f32 %v315, %v110
    %v322 = vrot.slane %v158, 4
    %v323 = vrot.slane %v159, 4
    %v324 = vrot.slane %v166, 4
    %v325 = vrot.slane %v167, 4
    %v334 = vrot.slane %v214, 4
    %v335 = vrot.slane %v215, 4
    %v336 = vrot.slane %v216, 4
    %v337 = vrot.slane %v217, 4
    %v346 = vrot.slane %v251, 4
    %v347 = vrot.slane %v252, 4
    %v348 = vrot.slane %v253, 4
    %v349 = vrot.slane %v254, 4
    %v354 = vrot.slane %v287, 4
    %v355 = vrot.slane %v288, 4
    %v356 = vrot.slane %v295, 4
    %v357 = vrot.slane %v296, 4
    %vm362 = vcmask 1043456
    %v363 = vsel %vm362, %v147, %v322
    %v364 = vsel %vm362, %v148, %v323
    %v365 = vsel %vm362, %v149, %v324
    %v366 = vsel %vm362, %v150, %v325
    %v367 = vsel %vm362, %v189, %v334
    %v368 = vsel %vm362, %v190, %v335
    %v369 = vsel %vm362, %v191, %v336
    %v370 = vsel %vm362, %v192, %v337
    %v371 = vsel %vm362, %v218, %v346
    %v372 = vsel %vm362, %v221, %v347
    %v373 = vsel %vm362, %v219, %v348
    %v374 = vsel %vm362, %v224, %v349
    %v375 = vsel %vm362, %v276, %v354
    %v376 = vsel %vm362, %v277, %v355
    %v377 = vsel %vm362, %v278, %v356
    %v378 = vsel %vm362, %v279, %v357
    %v379 = vsel %vm362, %v318, 1.0
    %v380 = vsel %vm362, %v319, 1.0
    %v381 = vsel %vm362, %v320, 1.0
    %v382 = vsel %vm362, %v321, 1.0
    %v383 = vld [vmem:[%s2] sm:$0xff]
    %vm384 = vcmask 302080
    %v386 = vsel %vm384, %v383, 0
    %vm388 = vcmask 1044480
    %v390 = vsel %vm388, %v379, 0
    %v393 = vsel %vm388, %v380, 0
    %v396 = vsel %vm388, %v381, 0
    %v399 = vsel %vm388, %v382, 0
    %401 = vmatprep.subr.mxu0 %v364
    %402 = vmatpush1.msra.mxu0 %v363
    %403 = vmatprep.subr.mxu0 %v368
    %404 = vmatpush1.msra.mxu0 %v367
    %405 = vmatprep.subr.mxu0 %v372
    %406 = vmatpush1.msra.mxu0 %v371
    %407 = vmatprep.subr.mxu0 %v376
    %408 = vmatpush1.msra.mxu0 %v375
    %409 = vmatprep.subr.mxu0 %v393
    %410 = vmatpush1.msra.mxu0 %v390
    %411 = vmatprep.subr.mxu0 0.0
    %412 = vmatpush1.msra.mxu0 0.0
    %413 = vmatprep.subr.mxu0 0.0
    %414 = vmatpush1.msra.mxu0 0.0
    %415 = vmatprep.subr.mxu0 0.0
    %416 = vmatpush1.msra.mxu0 0.0
    %417 = vmatprep.subr.mxu0 0.0
    %418 = vmatpush1.msra.mxu0 0.0
    %419 = vmatprep.subr.mxu0 0.0
    %420 = vmatpush1.msra.mxu0 0.0
    %421 = vmatprep.subr.mxu0 0.0
    %422 = vmatpush1.msra.mxu0 0.0
    %423 = vmatprep.subr.mxu0 0.0
    %424 = vmatpush1.msra.mxu0 0.0
    %425 = vmatprep.subr.mxu0 0.0
    %426 = vmatpush1.msra.mxu0 0.0
    %427 = vmatprep.subr.mxu0 0.0
    %428 = vmatpush1.msra.mxu0 0.0
    %429 = vmatprep.subr.mxu0 0.0
    %430 = vmatpush1.msra.mxu0 0.0
    %431 = vmatprep.subr.mxu0 0.0
    %432 = vmatpush1.msra.mxu0 0.0
    %433 = vmatprep.subr.mxu0 0.0
    %434 = vmatpush1.msra.mxu0 0.0
    %435 = vmatprep.subr.mxu0 0.0
    %436 = vmatpush1.msra.mxu0 0.0
    %437 = vmatprep.subr.mxu0 0.0
    %438 = vmatpush1.msra.mxu0 0.0
    %439 = vmatprep.subr.mxu0 0.0
    %440 = vmatpush1.msra.mxu0 0.0
    %441 = vmatprep.subr.mxu0 0.0
    %442 = vmatpush1.msra.mxu0 0.0
    %443 = vmatprep.subr.mxu0 0.0
    %444 = vmatpush1.msra.mxu0 0.0
    %445 = vmatprep.subr.mxu0 0.0
    %446 = vmatpush1.msra.mxu0 0.0
    %447 = vmatprep.subr.mxu0 0.0
    %448 = vmatpush1.msra.mxu0 0.0
    %449 = vmatprep.subr.mxu0 0.0
    %450 = vmatpush1.msra.mxu0 0.0
    %451 = vmatprep.subr.mxu0 0.0
    %452 = vmatpush1.msra.mxu0 0.0
    %453 = vmatprep.subr.mxu0 0.0
    %454 = vmatpush1.msra.mxu0 0.0
    %455 = vmatprep.subr.mxu0 0.0
    %456 = vmatpush1.msra.mxu0 0.0
    %457 = vmatprep.subr.mxu0 0.0
    %458 = vmatpush1.msra.mxu0 0.0
    %459 = vmatprep.subr.mxu0 0.0
    %460 = vmatpush1.msra.mxu0 0.0
    %461 = vmatprep.subr.mxu0 0.0
    %462 = vmatpush1.msra.mxu0 0.0
    %463 = vmatprep.subr.mxu0 0.0
    %464 = vmatpush1.msra.mxu0 0.0
    %465 = vmatprep.mubr.f32.mxu0 0.0
    %466 = vmatmul.mubr.f32.gmra.mrb[0].mxu0 %v386
    %v467 = vpop.f32.mrb[0].mxu0
    %v468 = vadd.f32 0.0, %v467
    %v469 = vpop.f32.mrb[0].mxu0
    %v470 = vadd.f32 0.0, %v469
    %471 = vdwg.mxu0
    %472 = vmatprep.subr.mxu0 %v366
    %473 = vmatpush1.msra.mxu0 %v365
    %474 = vmatprep.subr.mxu0 %v370
    %475 = vmatpush1.msra.mxu0 %v369
    %476 = vmatprep.subr.mxu0 %v374
    %477 = vmatpush1.msra.mxu0 %v373
    %478 = vmatprep.subr.mxu0 %v378
    %479 = vmatpush1.msra.mxu0 %v377
    %480 = vmatprep.subr.mxu0 %v399
    %481 = vmatpush1.msra.mxu0 %v396
    %482 = vmatprep.subr.mxu0 0.0
    %483 = vmatpush1.msra.mxu0 0.0
    %484 = vmatprep.subr.mxu0 0.0
    %485 = vmatpush1.msra.mxu0 0.0
    %486 = vmatprep.subr.mxu0 0.0
    %487 = vmatpush1.msra.mxu0 0.0
    %488 = vmatprep.subr.mxu0 0.0
    %489 = vmatpush1.msra.mxu0 0.0
    %490 = vmatprep.subr.mxu0 0.0
    %491 = vmatpush1.msra.mxu0 0.0
    %492 = vmatprep.subr.mxu0 0.0
    %493 = vmatpush1.msra.mxu0 0.0
    %494 = vmatprep.subr.mxu0 0.0
    %495 = vmatpush1.msra.mxu0 0.0
    %496 = vmatprep.subr.mxu0 0.0
    %497 = vmatpush1.msra.mxu0 0.0
    %498 = vmatprep.subr.mxu0 0.0
    %499 = vmatpush1.msra.mxu0 0.0
    %500 = vmatprep.subr.mxu0 0.0
    %501 = vmatpush1.msra.mxu0 0.0
    %502 = vmatprep.subr.mxu0 0.0
    %503 = vmatpush1.msra.mxu0 0.0
    %504 = vmatprep.subr.mxu0 0.0
    %505 = vmatpush1.msra.mxu0 0.0
    %506 = vmatprep.subr.mxu0 0.0
    %507 = vmatpush1.msra.mxu0 0.0
    %508 = vmatprep.subr.mxu0 0.0
    %509 = vmatpush1.msra.mxu0 0.0
    %510 = vmatprep.subr.mxu0 0.0
    %511 = vmatpush1.msra.mxu0 0.0
    %512 = vmatprep.subr.mxu0 0.0
    %513 = vmatpush1.msra.mxu0 0.0
    %514 = vmatprep.subr.mxu0 0.0
    %515 = vmatpush1.msra.mxu0 0.0
    %516 = vmatprep.subr.mxu0 0.0
    %517 = vmatpush1.msra.mxu0 0.0
    %518 = vmatprep.subr.mxu0 0.0
    %519 = vmatpush1.msra.mxu0 0.0
    %520 = vmatprep.subr.mxu0 0.0
    %521 = vmatpush1.msra.mxu0 0.0
    %522 = vmatprep.subr.mxu0 0.0
    %523 = vmatpush1.msra.mxu0 0.0
    %524 = vmatprep.subr.mxu0 0.0
    %525 = vmatpush1.msra.mxu0 0.0
    %526 = vmatprep.subr.mxu0 0.0
    %527 = vmatpush1.msra.mxu0 0.0
    %528 = vmatprep.subr.mxu0 0.0
    %529 = vmatpush1.msra.mxu0 0.0
    %530 = vmatprep.subr.mxu0 0.0
    %531 = vmatpush1.msra.mxu0 0.0
    %532 = vmatprep.subr.mxu0 0.0
    %533 = vmatpush1.msra.mxu0 0.0
    %534 = vmatprep.subr.mxu0 0.0
    %535 = vmatpush1.msra.mxu0 0.0
    %536 = vmatprep.mubr.f32.mxu0 0.0
    %537 = vmatmul.mubr.f32.gmra.mrb[0].mxu0 %v386
    %v538 = vpop.f32.mrb[0].mxu0
    %v539 = vadd.f32 0.0, %v538
    %v540 = vpop.f32.mrb[0].mxu0
    %v541 = vadd.f32 0.0, %v540
    %542 = vdwg.mxu0
    %543 = vst [vmem:[#allocation6] sm:$0xff] %v468
    %544 = vst [vmem:[#allocation6 + $0x8] sm:$0xff] %v470
    %s545 = scalar_lea.vmem [#allocation6], 16
    %546 = vst [vmem:[%s545] sm:$0xff] %v539
    %547 = vst [vmem:[%s545 + $0x8] sm:$0xff] %v541
    // Predicated region
    $region22: #{tpu_custom_call.1} parent=1 // pred_check
      _
    $region23: #{tpu_custom_call.1} parent=1 // pred_check_branch
      %549 = sbr.rel (0) target = $region25
    $region24: #{tpu_custom_call.1} parent=1 // pred_region
      %s551 = ssub.s32 512, 512
      %552 = vsyncadd [#allocation5], %s551
      %s553 = sshll.u32 [#allocation6], 4
      %s554 = int_to_ptr.vmem [resolvable:$true] %s553
      %559 = dma.vmem_to_hbm [thread:$0]  %s554, 512, %s4, [#allocation5], 256, 256, 16
    $region25: #{tpu_custom_call.1} parent=1 // pred_fallthru
      _
    // Predicated region
    $region26: #{tpu_custom_call.1} parent=1 // pred_check
      _
    $region27: #{tpu_custom_call.1} parent=1 // pred_check_branch
      %561 = sbr.rel (0) target = $region29
    $region28: #{tpu_custom_call.1} parent=1 // pred_region
      %562 = dma.done [#allocation5], 512
    $region29: #{tpu_custom_call.1} parent=1 // pred_fallthru
      _
    %563 = vsyncpa [#allocation4], 1
    %564 = vsyncpa [#allocation5], 1

</llo_original>
